<compile_context>
chip_gen: v5e
topology: v5e:2x2
jax: 0.10.0
libtpu: 0.0.40
codegen_flags: <defaults>
</compile_context>

<pallas_src>
import functools

import jax
import jax.numpy as jnp
from jax.experimental import pallas as pl
from jax.experimental.pallas import tpu as pltpu

FC_PAD = 128  # lane-dense padded width of the final Linear output


# ---------------------------------------------------------------------------
# small helpers: padding / weight & bias layout prep (gates at 128-aligned cols)
# ---------------------------------------------------------------------------
def _round_up(x, m):
    return (x + m - 1) // m * m


def _prep_gate_weight(w, H, Hp, in_pad=None):
    """w: (3H, in_dim) PyTorch layout -> (in_pad or in_dim, 3*Hp), transposed,
    with gate g occupying columns [g*Hp, g*Hp+H) (128-lane aligned)."""
    in_dim = w.shape[1]
    rows = in_dim if in_pad is None else in_pad
    wt = jnp.asarray(w, jnp.float32).T  # (in_dim, 3H)
    out = jnp.zeros((rows, 3 * Hp), jnp.float32)
    for g in range(3):
        out = out.at[:in_dim, g * Hp:g * Hp + H].set(wt[:, g * H:(g + 1) * H])
    return out


def _prep_gate_bias(b, H, Hp):
    b = jnp.asarray(b, jnp.float32)
    out = jnp.zeros((1, 3 * Hp), jnp.float32)
    for g in range(3):
        out = out.at[0, g * Hp:g * Hp + H].set(b[g * H:(g + 1) * H])
    return out


def _fold_bias(b_ih, b_hh, H, Hp):
    """Pre-fold biases. Combined (for the hoisted/input projection): r,z gates get
    b_ih + b_hh; the n gate gets only b_ih (b_hh_n must stay inside the r*(...) term,
    returned separately as a (1, Hp) row)."""
    b_ih = jnp.asarray(b_ih, jnp.float32)
    b_hh = jnp.asarray(b_hh, jnp.float32)
    combined = jnp.concatenate([b_ih[:2 * H] + b_hh[:2 * H], b_ih[2 * H:]])
    bi = _prep_gate_bias(combined, H, Hp)                               # (1, 3Hp)
    bhn = jnp.zeros((1, Hp), jnp.float32).at[0, :H].set(b_hh[2 * H:])   # (1, Hp)
    return bi, bhn


# ---------------------------------------------------------------------------
# Kernel 1: hoisted layer-1 input projection over ALL timesteps (parallel grid).
#   gi1 = X_flat @ W_ih1^T + (b_ih1 + b_hh1[r,z])   for every (t, b) row at once.
# ---------------------------------------------------------------------------
def input_proj_kernel(x_ref, w_ref, b_ref, o_ref):
    o_ref[...] = (
        jnp.dot(x_ref[...], w_ref[...], preferred_element_type=jnp.float32)
        + b_ref[...]
    )


def input_projection(x_flat, w, b, row_tile=512):
    R, F = x_flat.shape
    G = w.shape[1]
    row_tile = min(row_tile, _round_up(R, 8))
    Rp = _round_up(R, row_tile)
    if Rp != R:
        x_flat = jnp.zeros((Rp, F), x_flat.dtype).at[:R].set(x_flat)
    out = pl.pallas_call(
        input_proj_kernel,
        out_shape=jax.ShapeDtypeStruct((Rp, G), jnp.float32),
        grid=(Rp // row_tile,),
        in_specs=[
            pl.BlockSpec((row_tile, F), lambda i: (i, 0)),
            pl.BlockSpec((F, G), lambda i: (0, 0)),
            pl.BlockSpec((1, G), lambda i: (0, 0)),
        ],
        out_specs=pl.BlockSpec((row_tile, G), lambda i: (i, 0)),
        compiler_params=pltpu.CompilerParams(dimension_semantics=("parallel",)),
    )(x_flat, w, b)
    return out[:R]


# ---------------------------------------------------------------------------
# Kernel 2: fused 2-layer GRU recurrence + final Linear.
#   grid = (T // TB,), sequential ("arbitrary"); TB timesteps per grid step via an
#   unrolled fori_loop; h1/h2 carried in VMEM scratch; only output = FC(h2_last).
# ---------------------------------------------------------------------------
def gru2_fc_kernel(gi1_ref, whh1_ref, bhn1_ref, wih2_ref, bi2_ref, whh2_ref,
                   bhn2_ref, wfc_ref, bfc_ref, out_ref, h1_ref, h2_ref,
                   *, t_total, needs_mask):
    tb_idx = pl.program_id(0)
    TB = gi1_ref.shape[0]
    Hp = h1_ref.shape[1]

    @pl.when(tb_idx == 0)
    def _():
        h1_ref[...] = jnp.zeros_like(h1_ref)   # h_0 = zeros (matches torch.zeros)
        h2_ref[...] = jnp.zeros_like(h2_ref)

    # Hoist weight/bias loads out of the per-timestep loop.
    whh1 = whh1_ref[...]
    wih2 = wih2_ref[...]
    whh2 = whh2_ref[...]
    bi2 = bi2_ref[...]
    bhn1 = bhn1_ref[...]
    bhn2 = bhn2_ref[...]

    def gru_cell(gi, h, whh, bhn):
        # gi already contains b_ih (+ b_hh for r,z); bhn = b_hh_n (inside r*(...)).
        gh = jnp.dot(h, whh, preferred_element_type=jnp.float32)
        r = jax.nn.sigmoid(gi[:, 0:Hp] + gh[:, 0:Hp])
        z = jax.nn.sigmoid(gi[:, Hp:2 * Hp] + gh[:, Hp:2 * Hp])
        n = jnp.tanh(gi[:, 2 * Hp:3 * Hp] + r * (gh[:, 2 * Hp:3 * Hp] + bhn))
        return (1.0 - z) * n + z * h

    def step(i, carry):
        h1, h2 = carry
        gi1 = gi1_ref[i]                                            # (Bp, 3Hp)
        h1_new = gru_cell(gi1, h1, whh1, bhn1)
        gi2 = jnp.dot(h1_new, wih2, preferred_element_type=jnp.float32) + bi2
        h2_new = gru_cell(gi2, h2, whh2, bhn2)
        if needs_mask:
            valid = (tb_idx * TB + i) < t_total
            h1_new = jnp.where(valid, h1_new, h1)
            h2_new = jnp.where(valid, h2_new, h2)
        return (h1_new, h2_new)

    h1, h2 = jax.lax.fori_loop(0, TB, step, (h1_ref[...], h2_ref[...]), unroll=True)
    h1_ref[...] = h1
    h2_ref[...] = h2

    @pl.when(tb_idx == pl.num_programs(0) - 1)
    def _():
        # Fused final Linear on the last timestep's layer-2 hidden state.
        out_ref[...] = (
            jnp.dot(h2, wfc_ref[...], preferred_element_type=jnp.float32)
            + bfc_ref[...]
        )


# ---------------------------------------------------------------------------
# Full model wrapper
# ---------------------------------------------------------------------------
def gru_model_forward(x_btf, params, *, time_block=16):
    """x_btf: (B, T, input_size), batch_first like the PyTorch module. Returns (B, 1)."""
    layers = params["layers"]
    assert len(layers) == 2, "fused kernel implements the 2-layer GRU of the spec"
    B, T, F = x_btf.shape
    H = layers[0]["w_hh"].shape[1]
    Hp = _round_up(H, 128)          # lane-aligned per-gate width
    Bp = _round_up(B, 8)            # sublane-aligned batch
    G = 3 * Hp
    TB = min(time_block, T)         # timesteps per grid step
    n_tb = pl.cdiv(T, TB)
    Tp = n_tb * TB

    # --- weight / bias layout prep (zero-padded, gates at 128-aligned columns) ---
    wih1_p = _prep_gate_weight(layers[0]["w_ih"], H, Hp)                 # (F,  3Hp)
    whh1_p = _prep_gate_weight(layers[0]["w_hh"], H, Hp, in_pad=Hp)      # (Hp, 3Hp)
    bi1_p, bhn1_p = _fold_bias(layers[0]["b_ih"], layers[0]["b_hh"], H, Hp)

    wih2_p = _prep_ate = _prep_gate_weight(layers[1]["w_ih"], H, Hp, in_pad=Hp)
    whh2_p = _prep_gate_weight(layers[1]["w_hh"], H, Hp, in_pad=Hp)
    bi2_p, bhn2_p = _fold_bias(layers[1]["b_ih"], layers[1]["b_hh"], H, Hp)

    fc_w = jnp.asarray(params["fc_w"], jnp.float32)                      # (1, H)
    fc_b = jnp.asarray(params["fc_b"], jnp.float32)                      # (1,)
    wfc_p = jnp.zeros((Hp, FC_PAD), jnp.float32).at[:H, 0].set(fc_w[0])
    bfc_p = jnp.zeros((1, FC_PAD), jnp.float32).at[0, 0].set(fc_b[0])

    # --- hoisted layer-1 input projection over all timesteps (parallel) ---
    x_tbf = jnp.transpose(x_btf, (1, 0, 2)).astype(jnp.float32)          # (T, B, F)
    x_pad = jnp.zeros((Tp, Bp, F), jnp.float32).at[:T, :B, :].set(x_tbf)
    gi1 = input_projection(x_pad.reshape(Tp * Bp, F), wih1_p, bi1_p).reshape(Tp, Bp, G)

    # --- fused 2-layer recurrence + FC ---
    kernel = functools.partial(gru2_fc_kernel, t_total=T, needs_mask=(Tp != T))
    out_pad = pl.pallas_call(
        kernel,
        out_shape=jax.ShapeDtypeStruct((Bp, FC_PAD), jnp.float32),
        grid=(n_tb,),
        in_specs=[
            pl.BlockSpec((TB, Bp, G), lambda tb: (tb, 0, 0)),   # gi1 time-block
            pl.BlockSpec((Hp, G), lambda tb: (0, 0)),           # W_hh layer 1
            pl.BlockSpec((1, Hp), lambda tb: (0, 0)),           # b_hh_n layer 1
            pl.BlockSpec((Hp, G), lambda tb: (0, 0)),           # W_ih layer 2
            pl.BlockSpec((1, G), lambda tb: (0, 0)),            # folded bias layer 2
            pl.BlockSpec((Hp, G), lambda tb: (0, 0)),           # W_hh layer 2
            pl.BlockSpec((1, Hp), lambda tb: (0, 0)),           # b_hh_n layer 2
            pl.BlockSpec((Hp, FC_PAD), lambda tb: (0, 0)),      # FC weight
            pl.BlockSpec((1, FC_PAD), lambda tb: (0, 0)),       # FC bias
        ],
        out_specs=pl.BlockSpec((Bp, FC_PAD), lambda tb: (0, 0)),
        scratch_shapes=[pltpu.VMEM((Bp, Hp), jnp.float32),      # h1 carry
                        pltpu.VMEM((Bp, Hp), jnp.float32)],     # h2 carry
        compiler_params=pltpu.CompilerParams(dimension_semantics=("arbitrary",)),
    )(gi1, whh1_p, bhn1_p, wih2_p, bi2_p, whh2_p, bhn2_p, wfc_p, bfc_p)

    return out_pad[:B, :1]


# ---------------------------------------------------------------------------
# Params init (PyTorch GRU/Linear shapes, uniform(-1/sqrt(H), 1/sqrt(H)))
# ---------------------------------------------------------------------------
def init_params(key, input_size, hidden_size, num_layers=2):
    k = 1.0 / jnp.sqrt(jnp.float32(hidden_size))
    layers = []
    for layer in range(num_layers):
        in_f = input_size if layer == 0 else hidden_size
        key, k1, k2, k3, k4 = jax.random.split(key, 5)
        layers.append({
            "w_ih": jax.random.uniform(k1, (3 * hidden_size, in_f), jnp.float32, -k, k),
            "w_hh": jax.random.uniform(k2, (3 * hidden_size, hidden_size), jnp.float32, -k, k),
            "b_ih": jax.random.uniform(k3, (3 * hidden_size,), jnp.float32, -k, k),
            "b_hh": jax.random.uniform(k4, (3 * hidden_size,), jnp.float32, -k, k),
        })
    key, kf1, kf2 = jax.random.split(key, 3)
    fc_w = jax.random.uniform(kf1, (1, hidden_size), jnp.float32, -k, k)
    fc_b = jax.random.uniform(kf2, (1,), jnp.float32, -k, k)
    return {"layers": layers, "fc_w": fc_w, "fc_b": fc_b}


# Pure-JAX reference (same math, no Pallas), f32 matmul precision.
def _ref_forward(x_btf, params):
    with jax.default_matmul_precision("highest"):
        x = jnp.transpose(x_btf, (1, 0, 2)).astype(jnp.float32)
        h_seq = x
        for lp in params["layers"]:
            T, B, _ = h_seq.shape
            H = lp["w_hh"].shape[1]
            w_ih_t, w_hh_t = lp["w_ih"].T, lp["w_hh"].T

            def step(h, x_t, lp=lp, w_ih_t=w_ih_t, w_hh_t=w_hh_t, H=H):
                gi = x_t @ w_ih_t + lp["b_ih"]
                gh = h @ w_hh_t + lp["b_hh"]
                r = jax.nn.sigmoid(gi[:, :H] + gh[:, :H])
                z = jax.nn.sigmoid(gi[:, H:2 * H] + gh[:, H:2 * H])
                n = jnp.tanh(gi[:, 2 * H:] + r * gh[:, 2 * H:])
                h_new = (1 - z) * n + z * h
                return h_new, h_new

            _, h_seq = jax.lax.scan(step, jnp.zeros((B, H), jnp.float32), h_seq)
        return h_seq[-1] @ params["fc_w"].T + params["fc_b"]


if __name__ == "__main__":
    B, T, INPUT_SIZE, HIDDEN = 2, 8, 4, 32
    key = jax.random.PRNGKey(0)
    key, kx = jax.random.split(key)
    x = jax.random.normal(kx, (B, T, INPUT_SIZE), jnp.float32)

    params = init_params(key, INPUT_SIZE, HIDDEN, num_layers=2)

    # time_block=4 -> 2 sequential grid steps: exercises the VMEM hidden-state carry.
    out = gru_model_forward(x, params, time_block=4)
    out = jax.block_until_ready(out)

    ref = _ref_forward(x, params)
    assert out.shape == (B, 1)
    assert jnp.allclose(out, ref, atol=1e-4, rtol=1e-4), (out, ref)

    print("KERNEL_OK")
</pallas_src>

<mosaic_0001>
module attributes {stable_mosaic.version = 11 : i64} {
  func.func @input_proj_kernel(%arg0: i32, %arg1: memref<64x4xf32, #tpu.memory_space<vmem>>, %arg2: memref<4x384xf32, #tpu.memory_space<vmem>>, %arg3: memref<1x384xf32, #tpu.memory_space<vmem>>, %arg4: memref<64x384xf32, #tpu.memory_space<vmem>>) attributes {dimension_semantics = [#tpu.dimension_semantics<parallel>], iteration_bounds = array<i64: 1>, scalar_prefetch = 0 : i64, scratch_operands = 0 : i64, tpu.core_type = #tpu.core_type<tc>, window_params = [{transform_indices = @transform_0, window_bounds = array<i64: 64, 4>}, {pipeline_mode = #tpu.pipeline_mode<synchronous>, transform_indices = @transform_1, window_bounds = array<i64: 4, 384>}, {pipeline_mode = #tpu.pipeline_mode<synchronous>, transform_indices = @transform_2, window_bounds = array<i64: 1, 384>}, {transform_indices = @transform_3, window_bounds = array<i64: 64, 384>}]} {
    %c0 = arith.constant 0 : index
    %c0_0 = arith.constant 0 : index
    %0 = vector.load %arg1[%c0, %c0_0] : memref<64x4xf32, #tpu.memory_space<vmem>>, vector<64x4xf32>
    %c0_1 = arith.constant 0 : index
    %c0_2 = arith.constant 0 : index
    %1 = vector.load %arg2[%c0_1, %c0_2] : memref<4x384xf32, #tpu.memory_space<vmem>>, vector<4x384xf32>
    %cst = arith.constant dense<0.000000e+00> : vector<64x384xf32>
    %2 = tpu.matmul %0, %1, %cst {dimension_numbers = #tpu.dot_dimension_numbers<[1], [0], [0], [1], [0, 0, 1, 1], [], []>} : vector<64x4xf32>, vector<4x384xf32>, vector<64x384xf32> -> vector<64x384xf32>
    %c0_3 = arith.constant 0 : index
    %c0_4 = arith.constant 0 : index
    %3 = vector.load %arg3[%c0_3, %c0_4] : memref<1x384xf32, #tpu.memory_space<vmem>>, vector<1x384xf32>
    %4 = vector.broadcast %3 : vector<1x384xf32> to vector<64x384xf32>
    %5 = arith.addf %2, %4 : vector<64x384xf32>
    %c0_5 = arith.constant 0 : index
    %c0_6 = arith.constant 0 : index
    %6 = vector.load %arg4[%c0_5, %c0_6] : memref<64x384xf32, #tpu.memory_space<vmem>>, vector<64x384xf32>
    tpu.vector_store %arg4[%c0_5, %c0_6], %5 {strides = array<i32>} : memref<64x384xf32, #tpu.memory_space<vmem>>, vector<64x384xf32>,
    return
  }
  func.func @transform_0(%arg0: i32) -> (i32, i32) {
    %c0_i32 = arith.constant 0 : i32
    %c0_i32_0 = arith.constant 0 : i32
    return %arg0, %c0_i32 : i32, i32
  }
  func.func @transform_1(%arg0: i32) -> (i32, i32) {
    %c0_i32 = arith.constant 0 : i32
    %c0_i32_0 = arith.constant 0 : i32
    %c0_i32_1 = arith.constant 0 : i32
    return %c0_i32, %c0_i32_0 : i32, i32
  }
  func.func @transform_2(%arg0: i32) -> (i32, i32) {
    %c0_i32 = arith.constant 0 : i32
    %c0_i32_0 = arith.constant 0 : i32
    %c0_i32_1 = arith.constant 0 : i32
    return %c0_i32, %c0_i32_0 : i32, i32
  }
  func.func @transform_3(%arg0: i32) -> (i32, i32) {
    %c0_i32 = arith.constant 0 : i32
    %c0_i32_0 = arith.constant 0 : i32
    return %arg0, %c0_i32 : i32, i32
  }
}

</mosaic_0001>

<llo_original>
// kernel: tpu_custom_call.1
$region0: #{tpu_custom_call.1}
  #allocation0 [shape = 'u32[]', space=smem, size = 0x4, offset = 0x4, fixed_abs, tag = 'smem constant byte address 0x4 - core index']
  #allocation1 [shape = 'u32[72,128]{1,0:T(1,128)}', space=vmem, size = 0x9000, scoped, tag = 'internal scratch']
  %s0 = inlined_call_operand.vmem [shape: f32[64,4], index: 0, kind: input, shape index: {}]
  %s1 = inlined_call_operand.vmem [shape: f32[4,384], index: 1, kind: input, shape index: {}]
  %s2 = inlined_call_operand.vmem [shape: f32[1,384], index: 2, kind: input, shape index: {}]
  %s3 = inlined_call_operand.hbm [shape: f32[64,384], index: 3, kind: output, shape index: {}]
  %s4 = sld [smem:[#allocation0]]
  $region22: #{tpu_custom_call.1} parent=0
    _
  %s6 = ssub.s32 1, %s4
  %s7 = scalar_select 0, %s6, %s4
  $region1: #{tpu_custom_call.1} parent=0
    #allocation2 [shape = 'u8[98304]{0}', space=vmem, size = 0x18000, scoped, tag = 'output window, operand 0, single buffered']
    #allocation3 [shape = 's32[1]{0}', space=sflag, size = 0x4, scoped, tag = 'scoped memory for tpu_custom_call.1']
    %8 = vsyncpa [#allocation3], 0
    // Predicated region
    $region2: #{tpu_custom_call.1} parent=1 // pred_check
      _
    $region3: #{tpu_custom_call.1} parent=1 // pred_check_branch
      %10 = sbr.rel (0) target = $region5
    $region4: #{tpu_custom_call.1} parent=1 // pred_region
      _
    $region5: #{tpu_custom_call.1} parent=1 // pred_fallthru
      _
    // Predicated region
    $region6: #{tpu_custom_call.1} parent=1 // pred_check
      _
    $region7: #{tpu_custom_call.1} parent=1 // pred_check_branch
      %12 = sbr.rel (0) target = $region9
    $region8: #{tpu_custom_call.1} parent=1 // pred_region
      _
    $region9: #{tpu_custom_call.1} parent=1 // pred_fallthru
      _
    // Predicated region
    $region10: #{tpu_custom_call.1} parent=1 // pred_check
      _
    $region11: #{tpu_custom_call.1} parent=1 // pred_check_branch
      %14 = sbr.rel (0) target = $region13
    $region12: #{tpu_custom_call.1} parent=1 // pred_region
      _
    $region13: #{tpu_custom_call.1} parent=1 // pred_fallthru
      _
    %v15 = vld [vmem:[%s0] sm:$0xff]
    %v16 = vld [vmem:[%s0 + $0x8] sm:$0xff]
    %v17 = vld [vmem:[%s0 + $0x10] sm:$0xff]
    %v18 = vld [vmem:[%s0 + $0x18] sm:$0xff]
    %v19 = vld [vmem:[%s0 + $0x20] sm:$0xff]
    %v20 = vld [vmem:[%s0 + $0x28] sm:$0xff]
    %v21 = vld [vmem:[%s0 + $0x30] sm:$0xff]
    %v22 = vld [vmem:[%s0 + $0x38] sm:$0xff]
    %v23 = vld [vmem:[%s1] sm:$0xff]
    %v24 = vld [vmem:[%s1 + $0x8] sm:$0xf]
    %v25 = vld [vmem:[%s2] sm:$0x7]
    %v27 = vperm.slane %v25, 0
    %v28 = vperm.slane %v25, 1
    %v29 = vperm.slane %v25, 2
    %35 = vst [vmem:[#allocation1] ss:$2 sm:$0xff] %v23
    %s36 = scalar_lea.vmem [#allocation1], 16
    %37 = vst [vmem:[%s36] ss:$2 sm:$0xff] %v24
    %v38 = vld.sshfl [vmem:[#allocation1] sm:$0xff pattern:$0x75316420]
    %v39 = vld.sshfl [vmem:[#allocation1 + $0x8] sm:$0xff pattern:$0x75316420]
    %v40 = vld.sshfl [vmem:[#allocation1 + $0x10] sm:$0xff pattern:$0x75316420]
    %vm41 = vcmask 31744
    %v43 = vsel %vm41, %v15, 0
    %v46 = vsel %vm41, %v16, 0
    %v49 = vsel %vm41, %v17, 0
    %v52 = vsel %vm41, %v18, 0
    %v55 = vsel %vm41, %v19, 0
    %v58 = vsel %vm41, %v20, 0
    %v61 = vsel %vm41, %v21, 0
    %v64 = vsel %vm41, %v22, 0
    %vm66 = vcmask 1043456
    %v67 = vsel %vm66, %v38, 0
    %v69 = vsel %vm66, %v39, 0
    %v71 = vsel %vm66, %v40, 0
    %73 = vmatpush.msra.mxu0 0.0
    %74 = vmatpush.msra.mxu0 0.0
    %75 = vmatpush.msra.mxu0 0.0
    %76 = vmatpush.msra.mxu0 0.0
    %77 = vmatpush.msra.mxu0 0.0
    %78 = vmatpush.msra.mxu0 0.0
    %79 = vmatpush.msra.mxu0 0.0
    %80 = vmatpush.msra.mxu0 0.0
    %81 = vmatpush.msra.mxu0 0.0
    %82 = vmatpush.msra.mxu0 0.0
    %83 = vmatpush.msra.mxu0 0.0
    %84 = vmatpush.msra.mxu0 0.0
    %85 = vmatpush.msra.mxu0 0.0
    %86 = vmatpush.msra.mxu0 0.0
    %87 = vmatpush.msra.mxu0 0.0
    %88 = vmatpush.msra.mxu0 %v67
    %89 = vmatmul.f32.gmra.mxu0 %v43
    %v90 = vpop.f32.mrf.mxu0
    %v91 = vadd.f32 %v27, %v90
    %92 = vmatmul.f32.gmra.mxu0 %v46
    %v93 = vpop.f32.mrf.mxu0
    %v94 = vadd.f32 %v27, %v93
    %95 = vmatmul.f32.gmra.mxu0 %v49
    %v96 = vpop.f32.mrf.mxu0
    %v97 = vadd.f32 %v27, %v96
    %98 = vmatmul.f32.gmra.mxu0 %v52
    %v99 = vpop.f32.mrf.mxu0
    %v100 = vadd.f32 %v27, %v99
    %101 = vmatmul.f32.gmra.mxu0 %v55
    %v102 = vpop.f32.mrf.mxu0
    %v103 = vadd.f32 %v27, %v102
    %104 = vmatmul.f32.gmra.mxu0 %v58
    %v105 = vpop.f32.mrf.mxu0
    %v106 = vadd.f32 %v27, %v105
    %107 = vmatmul.f32.gmra.mxu0 %v61
    %v108 = vpop.f32.mrf.mxu0
    %v109 = vadd.f32 %v27, %v108
    %110 = vmatmul.f32.gmra.mxu0 %v64
    %v111 = vpop.f32.mrf.mxu0
    %v112 = vadd.f32 %v27, %v111
    %113 = vdwg.mxu0
    %114 = vmatpush.msra.mxu0 0.0
    %115 = vmatpush.msra.mxu0 0.0
    %116 = vmatpush.msra.mxu0 0.0
    %117 = vmatpush.msra.mxu0 0.0
    %118 = vmatpush.msra.mxu0 0.0
    %119 = vmatpush.msra.mxu0 0.0
    %120 = vmatpush.msra.mxu0 0.0
    %121 = vmatpush.msra.mxu0 0.0
    %122 = vmatpush.msra.mxu0 0.0
    %123 = vmatpush.msra.mxu0 0.0
    %124 = vmatpush.msra.mxu0 0.0
    %125 = vmatpush.msra.mxu0 0.0
    %126 = vmatpush.msra.mxu0 0.0
    %127 = vmatpush.msra.mxu0 0.0
    %128 = vmatpush.msra.mxu0 0.0
    %129 = vmatpush.msra.mxu0 %v69
    %130 = vmatmul.f32.gmra.mxu0 %v43
    %v131 = vpop.f32.mrf.mxu0
    %v132 = vadd.f32 %v28, %v131
    %133 = vmatmul.f32.gmra.mxu0 %v46
    %v134 = vpop.f32.mrf.mxu0
    %v135 = vadd.f32 %v28, %v134
    %136 = vmatmul.f32.gmra.mxu0 %v49
    %v137 = vpop.f32.mrf.mxu0
    %v138 = vadd.f32 %v28, %v137
    %139 = vmatmul.f32.gmra.mxu0 %v52
    %v140 = vpop.f32.mrf.mxu0
    %v141 = vadd.f32 %v28, %v140
    %142 = vmatmul.f32.gmra.mxu0 %v55
    %v143 = vpop.f32.mrf.mxu0
    %v144 = vadd.f32 %v28, %v143
    %145 = vmatmul.f32.gmra.mxu0 %v58
    %v146 = vpop.f32.mrf.mxu0
    %v147 = vadd.f32 %v28, %v146
    %148 = vmatmul.f32.gmra.mxu0 %v61
    %v149 = vpop.f32.mrf.mxu0
    %v150 = vadd.f32 %v28, %v149
    %151 = vmatmul.f32.gmra.mxu0 %v64
    %v152 = vpop.f32.mrf.mxu0
    %v153 = vadd.f32 %v28, %v152
    %154 = vdwg.mxu0
    %155 = vmatpush.msra.mxu0 0.0
    %156 = vmatpush.msra.mxu0 0.0
    %157 = vmatpush.msra.mxu0 0.0
    %158 = vmatpush.msra.mxu0 0.0
    %159 = vmatpush.msra.mxu0 0.0
    %160 = vmatpush.msra.mxu0 0.0
    %161 = vmatpush.msra.mxu0 0.0
    %162 = vmatpush.msra.mxu0 0.0
    %163 = vmatpush.msra.mxu0 0.0
    %164 = vmatpush.msra.mxu0 0.0
    %165 = vmatpush.msra.mxu0 0.0
    %166 = vmatpush.msra.mxu0 0.0
    %167 = vmatpush.msra.mxu0 0.0
    %168 = vmatpush.msra.mxu0 0.0
    %169 = vmatpush.msra.mxu0 0.0
    %170 = vmatpush.msra.mxu0 %v71
    %171 = vmatmul.f32.gmra.mxu0 %v43
    %v172 = vpop.f32.mrf.mxu0
    %v173 = vadd.f32 %v29, %v172
    %174 = vmatmul.f32.gmra.mxu0 %v46
    %v175 = vpop.f32.mrf.mxu0
    %v176 = vadd.f32 %v29, %v175
    %177 = vmatmul.f32.gmra.mxu0 %v49
    %v178 = vpop.f32.mrf.mxu0
    %v179 = vadd.f32 %v29, %v178
    %180 = vmatmul.f32.gmra.mxu0 %v52
    %v181 = vpop.f32.mrf.mxu0
    %v182 = vadd.f32 %v29, %v181
    %183 = vmatmul.f32.gmra.mxu0 %v55
    %v184 = vpop.f32.mrf.mxu0
    %v185 = vadd.f32 %v29, %v184
    %186 = vmatmul.f32.gmra.mxu0 %v58
    %v187 = vpop.f32.mrf.mxu0
    %v188 = vadd.f32 %v29, %v187
    %189 = vmatmul.f32.gmra.mxu0 %v61
    %v190 = vpop.f32.mrf.mxu0
    %v191 = vadd.f32 %v29, %v190
    %192 = vmatmul.f32.gmra.mxu0 %v64
    %v193 = vpop.f32.mrf.mxu0
    %v194 = vadd.f32 %v29, %v193
    %195 = vdwg.mxu0
    %196 = vst [vmem:[#allocation2] sm:$0xff] %v91
    %197 = vst [vmem:[#allocation2 + $0x8] sm:$0xff] %v132
    %198 = vst [vmem:[#allocation2 + $0x10] sm:$0xff] %v173
    %199 = vst [vmem:[#allocation2 + $0x18] sm:$0xff] %v94
    %200 = vst [vmem:[#allocation2 + $0x20] sm:$0xff] %v135
    %201 = vst [vmem:[#allocation2 + $0x28] sm:$0xff] %v176
    %202 = vst [vmem:[#allocation2 + $0x30] sm:$0xff] %v97
    %203 = vst [vmem:[#allocation2 + $0x38] sm:$0xff] %v138
    %204 = vst [vmem:[#allocation2 + $0x40] sm:$0xff] %v179
    %205 = vst [vmem:[#allocation2 + $0x48] sm:$0xff] %v100
    %206 = vst [vmem:[#allocation2 + $0x50] sm:$0xff] %v141
    %207 = vst [vmem:[#allocation2 + $0x58] sm:$0xff] %v182
    %208 = vst [vmem:[#allocation2 + $0x60] sm:$0xff] %v103
    %209 = vst [vmem:[#allocation2 + $0x68] sm:$0xff] %v144
    %210 = vst [vmem:[#allocation2 + $0x70] sm:$0xff] %v185
    %211 = vst [vmem:[#allocation2 + $0x78] sm:$0xff] %v106
    %212 = vst [vmem:[#allocation2 + $0x80] sm:$0xff] %v147
    %213 = vst [vmem:[#allocation2 + $0x88] sm:$0xff] %v188
    %214 = vst [vmem:[#allocation2 + $0x90] sm:$0xff] %v109
    %215 = vst [vmem:[#allocation2 + $0x98] sm:$0xff] %v150
    %216 = vst [vmem:[#allocation2 + $0xa0] sm:$0xff] %v191
    %217 = vst [vmem:[#allocation2 + $0xa8] sm:$0xff] %v112
    %218 = vst [vmem:[#allocation2 + $0xb0] sm:$0xff] %v153
    %219 = vst [vmem:[#allocation2 + $0xb8] sm:$0xff] %v194
    // Predicated region
    $region14: #{tpu_custom_call.1} parent=1 // pred_check
      _
    $region15: #{tpu_custom_call.1} parent=1 // pred_check_branch
      %221 = sbr.rel (0) target = $region17
    $region16: #{tpu_custom_call.1} parent=1 // pred_region
      %223 = vsyncadd [#allocation3], 0
      %s224 = sshll.u32 [#allocation2], 4
      %s225 = int_to_ptr.vmem [resolvable:$true] %s224
      %s226 = sshll.u32 %s3, 4
      %s227 = int_to_ptr.hbm [resolvable:$true] %s226
      %232 = dma.vmem_to_hbm [thread:$0]  %s225, 3072, %s227, [#allocation3], 384, 384, 24
    $region17: #{tpu_custom_call.1} parent=1 // pred_fallthru
      _
    // Predicated region
    $region18: #{tpu_custom_call.1} parent=1 // pred_check
      _
    $region19: #{tpu_custom_call.1} parent=1 // pred_check_branch
      %234 = sbr.rel (0) target = $region21
    $region20: #{tpu_custom_call.1} parent=1 // pred_region
      %236 = dma.done [#allocation3], 3072
    $region21: #{tpu_custom_call.1} parent=1 // pred_fallthru
      _
    %237 = vsyncpa [#allocation3], 1

</llo_original>
